<compile_context>
chip_gen: v7x
topology: tpu7x:2x2x1
jax: 0.10.0
libtpu: 0.0.40
codegen_flags: <defaults>
</compile_context>

<pallas_src>
import jax
import jax.numpy as jnp
from jax.experimental import pallas as pl
from jax.experimental.pallas import tpu as pltpu

_LANE = 128
_TARGET_BLOCK_BYTES = 2 * 1024 * 1024  # ~2 MiB input block; in+out double-buffered
                                       # stays well under every generation's scoped VMEM.


def _xsquare2_kernel(x_ref, o_ref):
    x = x_ref[...]
    o_ref[...] = x * (x + 1)


def _sublane_multiple(itemsize: int) -> int:
    # sub-32-bit dtypes pack 2x/4x rows per vreg sublane
    return {4: 8, 2: 16, 1: 32}.get(itemsize, 8)


def _choose_width(n_main: int, subl: int) -> int:
    # Widest lane dim (multiple of 128) that divides n_main; prefer widths that
    # still leave at least `subl` rows so vregs are fully populated.
    for cand in (4096, 2048, 1024, 512, 256, 128):
        if n_main % cand == 0 and (n_main // cand) >= subl:
            return cand
    for cand in (4096, 2048, 1024, 512, 256, 128):
        if n_main % cand == 0:
            return cand
    return _LANE  # unreachable: n_main is a multiple of 128 by construction


def act_xsquare2(x: jax.Array) -> jax.Array:
    """Elementwise x*x + x via a tiled, pipelined Pallas TPU kernel."""
    orig_shape = x.shape
    dtype = x.dtype
    n = x.size
    x_flat = x.reshape(-1)

    itemsize = jnp.dtype(dtype).itemsize
    subl = _sublane_multiple(itemsize)

    # Lane-aligned prefix handled by the kernel; (tiny) unaligned tail in jnp.
    n_main = (n // _LANE) * _LANE
    if n_main == 0:
        # Input smaller than one lane row: plain jnp is the right tool.
        return (x_flat * (x_flat + 1)).reshape(orig_shape)

    main = x_flat[:n_main]
    w = _choose_width(n_main, subl)
    rows = n_main // w

    # Row-tile sized to ~2 MiB per input block, rounded to the sublane multiple.
    tile_r = max(subl, (_TARGET_BLOCK_BYTES // (w * itemsize)) // subl * subl)
    tile_r = min(tile_r, rows)
    if rows > tile_r and tile_r % subl != 0:
        tile_r = rows  # safety net; (8,128)-legal either way

    grid = (pl.cdiv(rows, tile_r),)

    x2d = main.reshape(rows, w)
    out2d = pl.pallas_call(
        _xsquare2_kernel,
        out_shape=jax.ShapeDtypeStruct((rows, w), dtype),
        grid_spec=pl.GridSpec(
            grid=grid,
            in_specs=[pl.BlockSpec((tile_r, w), lambda i: (i, 0))],
            out_specs=pl.BlockSpec((tile_r, w), lambda i: (i, 0)),
        ),
        compiler_params=pltpu.CompilerParams(
            dimension_semantics=("parallel",),  # independent tiles; v7x dual-TC shard
        ),
    )(x2d)

    out_flat = out2d.reshape(-1)
    if n_main != n:
        t = x_flat[n_main:]
        out_flat = jnp.concatenate([out_flat, t * (t + 1)])
    return out_flat.reshape(orig_shape)


if __name__ == "__main__":
    key = jax.random.PRNGKey(0)
    x = jax.random.normal(key, (2, 4, 16, 16), dtype=jnp.float32)

    y = act_xsquare2(x)
    jax.block_until_ready(y)

    # Reference check against the PyTorch module semantics: input*input + input.
    y_ref = x * x + x
    assert y.shape == x.shape and y.dtype == x.dtype
    assert jnp.allclose(y, y_ref, atol=1e-6, rtol=1e-5)

    print("KERNEL_OK")
</pallas_src>

<mosaic_0001>
module attributes {stable_mosaic.version = 11 : i64} {
  func.func @_xsquare2_kernel(%arg0: i32, %arg1: memref<8x256xf32, #tpu.memory_space<vmem>>, %arg2: memref<8x256xf32, #tpu.memory_space<vmem>>) attributes {dimension_semantics = [#tpu.dimension_semantics<parallel>], iteration_bounds = array<i64: 1>, scalar_prefetch = 0 : i64, scratch_operands = 0 : i64, tpu.core_type = #tpu.core_type<tc>, window_params = [{transform_indices = @transform_0, window_bounds = array<i64: 8, 256>}, {transform_indices = @transform_1, window_bounds = array<i64: 8, 256>}]} {
    %c0 = arith.constant 0 : index
    %c0_0 = arith.constant 0 : index
    %0 = vector.load %arg1[%c0, %c0_0] : memref<8x256xf32, #tpu.memory_space<vmem>>, vector<8x256xf32>
    %cst = arith.constant 1.000000e+00 : f32
    %1 = vector.broadcast %cst : f32 to vector<8x256xf32>
    %2 = arith.addf %0, %1 : vector<8x256xf32>
    %3 = arith.mulf %0, %2 : vector<8x256xf32>
    %c0_1 = arith.constant 0 : index
    %c0_2 = arith.constant 0 : index
    %4 = vector.load %arg2[%c0_1, %c0_2] : memref<8x256xf32, #tpu.memory_space<vmem>>, vector<8x256xf32>
    tpu.vector_store %arg2[%c0_1, %c0_2], %3 {strides = array<i32>} : memref<8x256xf32, #tpu.memory_space<vmem>>, vector<8x256xf32>,
    return
  }
  func.func @transform_0(%arg0: i32) -> (i32, i32) {
    %c0_i32 = arith.constant 0 : i32
    %c0_i32_0 = arith.constant 0 : i32
    return %arg0, %c0_i32 : i32, i32
  }
  func.func @transform_1(%arg0: i32) -> (i32, i32) {
    %c0_i32 = arith.constant 0 : i32
    %c0_i32_0 = arith.constant 0 : i32
    return %arg0, %c0_i32 : i32, i32
  }
}

</mosaic_0001>

<llo_original>
// kernel: tpu_custom_call.1
$region0: #{tpu_custom_call.1}
  #allocation0 [shape = 'u32[]', space=smem, size = 0x4, offset = 0x4, fixed_abs, tag = 'smem constant byte address 0x4 - core index']
  #allocation1 [shape = 'u32[144,128]{1,0:T(1,128)}', space=vmem, size = 0x12000, scoped, tag = 'internal scratch']
  %s0 = inlined_call_operand.hbm [shape: f32[8,256], index: 0, kind: input, shape index: {}]
  %s1 = inlined_call_operand.hbm [shape: f32[8,256], index: 1, kind: output, shape index: {}]
  %s2 = sld [smem:[#allocation0]]
  $region18: #{tpu_custom_call.1} parent=0
    _
  %s4 = ssub.s32 1, %s2
  %s5 = scalar_select 0, %s4, %s2
  $region1: #{tpu_custom_call.1} parent=0
    #allocation2 [shape = 'u8[8192]{0}', space=vmem, size = 0x2000, scoped, tag = 'input window, operand 0, single buffered']
    #allocation3 [shape = 's32[1]{0}', space=sflag, size = 0x4, scoped, tag = 'scoped memory for tpu_custom_call.1']
    #allocation4 [shape = 's32[1]{0}', space=sflag, size = 0x4, scoped, tag = 'scoped memory for tpu_custom_call.1']
    #allocation5 [shape = 'u8[8192]{0}', space=vmem, size = 0x2000, scoped, tag = 'output window, operand 0, single buffered']
    %6 = vsyncpa [#allocation3], 0
    %7 = vsyncpa [#allocation4], 0
    // Predicated region
    $region2: #{tpu_custom_call.1} parent=1 // pred_check
      _
    $region3: #{tpu_custom_call.1} parent=1 // pred_check_branch
      %9 = sbr.rel (0) target = $region5
    $region4: #{tpu_custom_call.1} parent=1 // pred_region
      %s11 = ssub.s32 256, 256
      %12 = vsyncadd [#allocation3], %s11
      %s14 = sshll.u32 [#allocation2], 4
      %s15 = int_to_ptr.vmem [resolvable:$true] %s14
      %17 = dma.hbm_to_vmem [thread:$0]  %s0, 256, %s15, [#allocation3]
    $region5: #{tpu_custom_call.1} parent=1 // pred_fallthru
      _
    // Predicated region
    $region6: #{tpu_custom_call.1} parent=1 // pred_check
      _
    $region7: #{tpu_custom_call.1} parent=1 // pred_check_branch
      %19 = sbr.rel (0) target = $region9
    $region8: #{tpu_custom_call.1} parent=1 // pred_region
      %20 = dma.done [#allocation3], 256
    $region9: #{tpu_custom_call.1} parent=1 // pred_fallthru
      _
    %v21 = vld [vmem:[#allocation2] sm:$0xff]
    %v22 = vld [vmem:[#allocation2 + $0x8] sm:$0xff]
    %v23 = vadd.f32 %v21, 1.0
    %v24 = vadd.f32 %v22, 1.0
    %v25 = vmul.f32 %v21, %v23
    %v26 = vmul.f32 %v22, %v24
    %27 = vst [vmem:[#allocation5] sm:$0xff] %v25
    %28 = vst [vmem:[#allocation5 + $0x8] sm:$0xff] %v26
    // Predicated region
    $region10: #{tpu_custom_call.1} parent=1 // pred_check
      _
    $region11: #{tpu_custom_call.1} parent=1 // pred_check_branch
      %30 = sbr.rel (0) target = $region13
    $region12: #{tpu_custom_call.1} parent=1 // pred_region
      %s32 = ssub.s32 256, 256
      %33 = vsyncadd [#allocation4], %s32
      %s35 = sshll.u32 [#allocation5], 4
      %s36 = int_to_ptr.vmem [resolvable:$true] %s35
      %38 = dma.vmem_to_hbm [thread:$0]  %s36, 256, %s1, [#allocation4]
    $region13: #{tpu_custom_call.1} parent=1 // pred_fallthru
      _
    // Predicated region
    $region14: #{tpu_custom_call.1} parent=1 // pred_check
      _
    $region15: #{tpu_custom_call.1} parent=1 // pred_check_branch
      %40 = sbr.rel (0) target = $region17
    $region16: #{tpu_custom_call.1} parent=1 // pred_region
      %41 = dma.done [#allocation4], 256
    $region17: #{tpu_custom_call.1} parent=1 // pred_fallthru
      _
    %42 = vsyncpa [#allocation3], 1
    %43 = vsyncpa [#allocation4], 1

</llo_original>
